<compile_context>
chip_gen: v5e
topology: v5e:2x2
jax: 0.10.0
libtpu: 0.0.40
codegen_flags: <defaults>
</compile_context>

<pallas_src>
import functools
import math

import jax
import jax.numpy as jnp
from jax.experimental import pallas as pl
from jax.experimental.pallas import tpu as pltpu


_MIB = 1024 * 1024


def _round_up(x, m):
    return ((x + m - 1) // m) * m


def _cdiv(a, b):
    return (a + b - 1) // b


@functools.lru_cache(maxsize=None)
def _tpu_tuning():
    """Returns (vmem_budget_bytes, vmem_limit_bytes, vpu_has_bf16)."""
    kind = ""
    try:
        dev = jax.devices()[0]
        if dev.platform == "tpu":
            kind = dev.device_kind.lower()
    except Exception:  # best-effort hardware query only
        pass
    # v5e and older have no bf16 VPU/EUP datapath; v6e/v7x do.
    old_gen = any(t in kind for t in ("v2", "v3", "v4", "v5"))
    vpu_has_bf16 = bool(kind) and not old_gen
    try:
        vmem_capacity = pltpu.get_tpu_info().vmem_capacity_bytes
    except Exception:  # best-effort; fall back on device_kind heuristic
        vmem_capacity = 64 * _MIB if "v7" in kind else 128 * _MIB
    if vmem_capacity >= 128 * _MIB:              # v5e / v6e: 128 MiB physical
        return 96 * _MIB, 100 * _MIB, vpu_has_bf16
    return 40 * _MIB, 48 * _MIB, vpu_has_bf16    # v7x: 64 MiB physical


@functools.lru_cache(maxsize=None)
def _buffered_beta_supported():
    """Probe once whether pipeline_mode=pl.Buffered(1) lowers on this build.

    Isolated capability probe (tiny kernel); the real decoder call carries no
    try/except so genuine lowering/runtime bugs surface.
    """
    def _probe_kernel(x_ref, o_ref):
        o_ref[...] = x_ref[...] * 2.0

    try:
        call = pl.pallas_call(
            _probe_kernel,
            out_shape=jax.ShapeDtypeStruct((16, 128), jnp.float32),
            grid_spec=pltpu.PrefetchScalarGridSpec(
                num_scalar_prefetch=0,
                grid=(2,),
                in_specs=[pl.BlockSpec((8, 128), lambda i: (0, 0),
                                       pipeline_mode=pl.Buffered(1))],
                out_specs=pl.BlockSpec((8, 128), lambda i: (i, 0)),
            ),
        )
        jax.block_until_ready(call(jnp.ones((8, 128), jnp.float32)))
        return True
    except Exception:  # capability probe only: any failure => double-buffer beta
        return False


def _pick_batch_tile(batch, tp, vocab, out_bytes, itm_bytes, vmem_budget):
    """Largest batch tile whose per-step working set fits the VMEM budget.

    theta and the output are double-buffered by the pipeline; beta is
    single-buffered (constant block index, Buffered(1)); the softmax keeps a
    [tb, V] f32 logits block plus a [tb, V] exp block (bf16 or f32).
    """
    tb = 1024
    while tb > 8:
        est = (2 * tb * tp * 2                  # theta bf16, double-buffered
               + tp * vocab * 2                 # beta bf16, single-buffered
               + 2 * tb * vocab * out_bytes     # output, double-buffered
               + tb * vocab * itm_bytes)        # softmax intermediates
        if est <= vmem_budget:
            break
        tb //= 2
    return max(8, min(tb, _round_up(batch, 8)))


def _make_decoder_kernel(v_actual, v_padded, bf16_epilogue):
    mask_pad = v_padded != v_actual

    def kernel(theta_ref, beta_ref, out_ref):
        # theta_ref: [tb, Tp] bf16, beta_ref: [Tp, Vp] bf16, out_ref: [tb, Vp].
        logits = jnp.dot(theta_ref[...], beta_ref[...],
                         preferred_element_type=jnp.float32)
        if mask_pad:
            # Padded vocab columns must not contribute to the softmax denom.
            col = jax.lax.broadcasted_iota(jnp.int32, logits.shape, 1)
            logits = jnp.where(col < v_actual, logits, -jnp.inf)

        # Numerically stable softmax over the vocab (lane) axis, matching
        # torch.nn.functional.softmax(..., dim=1).
        row_max = jnp.max(logits, axis=-1, keepdims=True)
        shifted = logits - row_max
        if bf16_epilogue:
            # v6e/v7x: bf16 EUP/VPU -> half the [tb, V] intermediate VMEM.
            e = jnp.exp(shifted.astype(jnp.bfloat16))
            denom = jnp.sum(e, axis=-1, keepdims=True, dtype=jnp.float32)
            inv = pl.reciprocal(denom, approx=True).astype(jnp.bfloat16)
        else:
            e = jnp.exp(shifted)
            denom = jnp.sum(e, axis=-1, keepdims=True)
            inv = pl.reciprocal(denom, approx=True)
        out_ref[...] = (e * inv).astype(out_ref.dtype)

    return kernel


def _make_decoder_call(bp, tp, vp, tb, out_dtype, v_actual, bf16_epilogue,
                       vmem_limit, beta_pipeline_mode):
    kernel = _make_decoder_kernel(v_actual, vp, bf16_epilogue)
    beta_kwargs = {}
    if beta_pipeline_mode is not None:
        beta_kwargs = dict(pipeline_mode=beta_pipeline_mode)
    return pl.pallas_call(
        kernel,
        out_shape=jax.ShapeDtypeStruct((bp, vp), out_dtype),
        grid_spec=pltpu.PrefetchScalarGridSpec(
            num_scalar_prefetch=0,
            grid=(bp // tb,),
            in_specs=[
                pl.BlockSpec((tb, tp), lambda i: (i, 0)),            # theta tile
                pl.BlockSpec((tp, vp), lambda i: (0, 0),             # full beta
                             **beta_kwargs),
            ],
            out_specs=pl.BlockSpec((tb, vp), lambda i: (i, 0)),
        ),
        compiler_params=pltpu.CompilerParams(
            dimension_semantics=("parallel",),
            vmem_limit_bytes=vmem_limit,
        ),
    )


def prodlda_decoder_forward(theta, beta, topic_dim, *,
                            out_dtype=jnp.bfloat16, use_pallas=None):
    """ProdLDADecoder.forward (eval mode).

    theta: [B, T], beta: [T, V].
    Returns (prior_mean [T], prior_variance [T], reconstruct_word_dist [B, V]).

    Note: theta/beta feed the MXU as bf16 (f32 accumulation) and the default
    output dtype is bf16 (halves HBM writeback); pass out_dtype=jnp.float32 if
    consumers need the softmax normalization at full f32 precision.
    """
    B, T = theta.shape
    T2, V = beta.shape
    assert T == T2 == topic_dim

    prior_mean = jnp.zeros((topic_dim,), dtype=jnp.float32)
    prior_variance = jnp.full(
        (topic_dim,), 1.0 - 1.0 / topic_dim, dtype=jnp.float32)

    # TODO(synk): Dropout(p=0.2) on theta is eval-mode identity here; the
    # training-mode stochastic mask is intentionally omitted.

    # bf16 operands: native MXU datapath, half the HBM/VMEM traffic.
    theta_bf = theta.astype(jnp.bfloat16)
    beta_bf = beta.astype(jnp.bfloat16)

    if use_pallas is None:
        # For tiny problems the pallas_call launch/DMA overhead dominates the
        # <1 us of work; let XLA fuse matmul + softmax instead.
        use_pallas = (B * V) >= (1 << 20)

    if not use_pallas:
        logits = jnp.dot(theta_bf, beta_bf, preferred_element_type=jnp.float32)
        dist = jax.nn.softmax(logits, axis=1).astype(out_dtype)
        return prior_mean, prior_variance, dist

    vmem_budget, vmem_limit, vpu_bf16 = _tpu_tuning()
    out_bytes = jnp.dtype(out_dtype).itemsize
    # bf16 epilogue only when the chip has a bf16 VPU/EUP and the caller is
    # taking a <=16-bit output anyway (otherwise keep the f32 precision).
    bf16_epilogue = vpu_bf16 and out_bytes <= 2
    itm_bytes = 4 + (2 if bf16_epilogue else 4)

    # Pad topic dim to a multiple of 16 (bf16 packs 2 rows per sublane) and the
    # vocab to a multiple of 128 (lane-dense, unmasked output stores). Zero
    # padding on T is matmul-neutral; padded V columns are masked in-kernel.
    Tp = _round_up(T, 16)
    Vp = _round_up(V, 128)
    if Tp != T:
        theta_bf = jnp.pad(theta_bf, ((0, 0), (0, Tp - T)))
        beta_bf = jnp.pad(beta_bf, ((0, Tp - T), (0, 0)))
    if Vp != V:
        beta_bf = jnp.pad(beta_bf, ((0, 0), (0, Vp - V)))

    # VMEM-budgeted batch tile; pad the ragged batch tail with zero rows
    # (zero rows softmax to a uniform dist and are sliced off below).
    tb = _pick_batch_tile(B, Tp, Vp, out_bytes, itm_bytes, vmem_budget)
    B8 = _round_up(B, 8)
    if B8 >= 16 and _cdiv(B8, tb) < 2:
        # Guarantee >= 2 grid steps so "parallel" can shard across v7x's 2 TCs.
        tb = _round_up(_cdiv(B8, 2), 8)
    Bp = _round_up(B, tb)
    if Bp != B:
        theta_bf = jnp.pad(theta_bf, ((0, Bp - B), (0, 0)))

    # Full-V blocks on purpose: the op is HBM-writeback-bound (tiny K), so a V
    # grid axis / online softmax would only add reduction passes and per-step
    # overhead. Spend VMEM on a bigger batch tile instead.
    beta_mode = pl.Buffered(1) if _buffered_beta_supported() else None
    call = _make_decoder_call(Bp, Tp, Vp, tb, out_dtype, V, bf16_epilogue,
                              vmem_limit, beta_mode)
    dist_padded = call(theta_bf, beta_bf)

    dist = dist_padded[:B, :V]
    return prior_mean, prior_variance, dist


def _xavier_uniform(key, shape, dtype=jnp.float32):
    fan_in, fan_out = shape[0], shape[1]
    bound = math.sqrt(6.0 / (fan_in + fan_out))
    return jax.random.uniform(key, shape, dtype, minval=-bound, maxval=bound)


if __name__ == "__main__":
    # Small shapes consistent with the module: batch=8, topic_dim=25.
    # vocab=250 (not a multiple of 128) exercises the padded-vocab mask path.
    batch = 8
    topic_dim = 25
    input_size = 250  # vocabulary size

    key = jax.random.PRNGKey(0)
    k_theta, k_beta = jax.random.split(key)

    # theta is typically a softmax over topics; keep it deterministic.
    theta_logits = jax.random.normal(k_theta, (batch, topic_dim), jnp.float32)
    theta = jax.nn.softmax(theta_logits, axis=-1)

    # Deterministic xavier_uniform init for beta (topic_dim x input_size).
    beta = _xavier_uniform(k_beta, (topic_dim, input_size))

    # use_pallas=True: auto-dispatch would pick plain XLA at these toy shapes,
    # but we force the Pallas path so the kernel is exercised.
    prior_mean, prior_variance, dist = prodlda_decoder_forward(
        theta, beta, topic_dim, use_pallas=True)
    jax.block_until_ready(dist)

    # Reference with the same bf16-cast operands / f32 accumulation.
    theta_ref = theta.astype(jnp.bfloat16).astype(jnp.float32)
    beta_ref = beta.astype(jnp.bfloat16).astype(jnp.float32)
    ref = jax.nn.softmax(theta_ref @ beta_ref, axis=1)

    dist_f32 = dist.astype(jnp.float32)
    assert dist.shape == (batch, input_size)
    assert prior_mean.shape == (topic_dim,)
    assert prior_variance.shape == (topic_dim,)
    max_err = float(jnp.max(jnp.abs(dist_f32 - ref)))
    assert max_err < 2e-3, max_err
    assert jnp.allclose(jnp.sum(dist_f32, axis=1), 1.0, atol=1e-2)
    assert jnp.allclose(prior_variance, 1.0 - 1.0 / topic_dim)

    print("KERNEL_OK")
</pallas_src>

<mosaic_0001>
module attributes {stable_mosaic.version = 11 : i64} {
  func.func @_probe_kernel(%arg0: i32, %arg1: memref<8x128xf32, #tpu.memory_space<vmem>>, %arg2: memref<8x128xf32, #tpu.memory_space<vmem>>) attributes {dimension_semantics = [#tpu.dimension_semantics<arbitrary>], iteration_bounds = array<i64: 2>, scalar_prefetch = 0 : i64, scratch_operands = 0 : i64, tpu.core_type = #tpu.core_type<tc>, window_params = [{pipeline_mode = #tpu.pipeline_mode<synchronous>, transform_indices = @transform_0, window_bounds = array<i64: 8, 128>}, {transform_indices = @transform_1, window_bounds = array<i64: 8, 128>}]} {
    %c0 = arith.constant 0 : index
    %c0_0 = arith.constant 0 : index
    %0 = vector.load %arg1[%c0, %c0_0] : memref<8x128xf32, #tpu.memory_space<vmem>>, vector<8x128xf32>
    %cst = arith.constant 2.000000e+00 : f32
    %1 = vector.broadcast %cst : f32 to vector<8x128xf32>
    %2 = arith.mulf %0, %1 : vector<8x128xf32>
    %c0_1 = arith.constant 0 : index
    %c0_2 = arith.constant 0 : index
    %3 = vector.load %arg2[%c0_1, %c0_2] : memref<8x128xf32, #tpu.memory_space<vmem>>, vector<8x128xf32>
    tpu.vector_store %arg2[%c0_1, %c0_2], %2 {strides = array<i32>} : memref<8x128xf32, #tpu.memory_space<vmem>>, vector<8x128xf32>,
    return
  }
  func.func @transform_0(%arg0: i32) -> (i32, i32) {
    %c0_i32 = arith.constant 0 : i32
    %c0_i32_0 = arith.constant 0 : i32
    %c0_i32_1 = arith.constant 0 : i32
    return %c0_i32, %c0_i32_0 : i32, i32
  }
  func.func @transform_1(%arg0: i32) -> (i32, i32) {
    %c0_i32 = arith.constant 0 : i32
    %c0_i32_0 = arith.constant 0 : i32
    return %arg0, %c0_i32 : i32, i32
  }
}

module attributes {stable_mosaic.version = 11 : i64} {
  func.func @kernel(%arg0: i32, %arg1: memref<8x32xbf16, #tpu.memory_space<vmem>>, %arg2: memref<32x256xbf16, #tpu.memory_space<vmem>>, %arg3: memref<8x256xbf16, #tpu.memory_space<vmem>>) attributes {dimension_semantics = [#tpu.dimension_semantics<parallel>], iteration_bounds = array<i64: 1>, scalar_prefetch = 0 : i64, scratch_operands = 0 : i64, tpu.core_type = #tpu.core_type<tc>, window_params = [{transform_indices = @transform_0, window_bounds = array<i64: 8, 32>}, {pipeline_mode = #tpu.pipeline_mode<synchronous>, transform_indices = @transform_1, window_bounds = array<i64: 32, 256>}, {transform_indices = @transform_2, window_bounds = array<i64: 8, 256>}]} {
    %c0 = arith.constant 0 : index
    %c0_0 = arith.constant 0 : index
    %0 = vector.load %arg1[%c0, %c0_0] : memref<8x32xbf16, #tpu.memory_space<vmem>>, vector<8x32xbf16>
    %c0_1 = arith.constant 0 : index
    %c0_2 = arith.constant 0 : index
    %1 = vector.load %arg2[%c0_1, %c0_2] : memref<32x256xbf16, #tpu.memory_space<vmem>>, vector<32x256xbf16>
    %cst = arith.constant dense<0.000000e+00> : vector<8x256xf32>
    %2 = tpu.matmul %0, %1, %cst {dimension_numbers = #tpu.dot_dimension_numbers<[1], [0], [0], [1], [0, 0, 1, 1], [], []>} : vector<8x32xbf16>, vector<32x256xbf16>, vector<8x256xf32> -> vector<8x256xf32>
    %3 = tpu.iota {dimensions = array<i32: 1>} : vector<8x256xi32>
    %c250_i32 = arith.constant 250 : i32
    %4 = vector.broadcast %c250_i32 : i32 to vector<8x256xi32>
    %5 = arith.cmpi slt, %3, %4 : vector<8x256xi32>
    %cst_3 = arith.constant 0xFF800000 : f32
    %6 = vector.broadcast %cst_3 : f32 to vector<8x256xf32>
    %7 = arith.select %5, %2, %6 : vector<8x256xi1>, vector<8x256xf32>
    %cst_4 = arith.constant dense<0xFF800000> : vector<8xf32>
    %8 = vector.multi_reduction <maximumf>, %7, %cst_4 [1] : vector<8x256xf32> to vector<8xf32>
    %9 = vector.shape_cast %8 : vector<8xf32> to vector<8x1xf32>
    %10 = vector.broadcast %9 : vector<8x1xf32> to vector<8x256xf32>
    %11 = arith.subf %7, %10 : vector<8x256xf32>
    %12 = math.exp %11 : vector<8x256xf32>
    %cst_5 = arith.constant dense<0.000000e+00> : vector<8xf32>
    %13 = vector.multi_reduction <add>, %12, %cst_5 [1] : vector<8x256xf32> to vector<8xf32>
    %14 = vector.shape_cast %13 : vector<8xf32> to vector<8x1xf32>
    %15 = tpu.reciprocal %14 {approx = true} : vector<8x1xf32> -> vector<8x1xf32>
    %16 = vector.broadcast %15 : vector<8x1xf32> to vector<8x256xf32>
    %17 = arith.mulf %12, %16 : vector<8x256xf32>
    %18 = arith.truncf %17 : vector<8x256xf32> to vector<8x256xbf16>
    %c0_6 = arith.constant 0 : index
    %c0_7 = arith.constant 0 : index
    %19 = vector.load %arg3[%c0_6, %c0_7] : memref<8x256xbf16, #tpu.memory_space<vmem>>, vector<8x256xbf16>
    tpu.vector_store %arg3[%c0_6, %c0_7], %18 {strides = array<i32>} : memref<8x256xbf16, #tpu.memory_space<vmem>>, vector<8x256xbf16>,
    return
  }
  func.func @transform_0(%arg0: i32) -> (i32, i32) {
    %c0_i32 = arith.constant 0 : i32
    %c0_i32_0 = arith.constant 0 : i32
    return %arg0, %c0_i32 : i32, i32
  }
  func.func @transform_1(%arg0: i32) -> (i32, i32) {
    %c0_i32 = arith.constant 0 : i32
    %c0_i32_0 = arith.constant 0 : i32
    %c0_i32_1 = arith.constant 0 : i32
    return %c0_i32, %c0_i32_0 : i32, i32
  }
  func.func @transform_2(%arg0: i32) -> (i32, i32) {
    %c0_i32 = arith.constant 0 : i32
    %c0_i32_0 = arith.constant 0 : i32
    return %arg0, %c0_i32 : i32, i32
  }
}

</mosaic_0001>

<llo_original>
// kernel: tpu_custom_call.1
$region0: #{tpu_custom_call.1}
  #allocation0 [shape = 'u32[]', space=smem, size = 0x4, offset = 0x4, fixed_abs, tag = 'smem constant byte address 0x4 - core index']
  #allocation1 [shape = 'u32[72,128]{1,0:T(1,128)}', space=vmem, size = 0x9000, scoped, tag = 'internal scratch']
  %s0 = inlined_call_operand.hbm [shape: f32[8,128], index: 0, kind: input, shape index: {}]
  %s1 = inlined_call_operand.hbm [shape: f32[16,128], index: 1, kind: output, shape index: {}]
  %s2 = sld [smem:[#allocation0]]
  $region41: #{tpu_custom_call.1} parent=0
    _
  %s4 = ssub.s32 1, %s2
  %s5 = scalar_select 0, %s4, %s2
  $region1: #{tpu_custom_call.1} parent=0
    #allocation2 [shape = 'u8[4096]{0}', space=vmem, size = 0x1000, scoped, tag = 'input window, operand 0, single buffered']
    #allocation3 [shape = 's32[2]{0}', space=sflag, size = 0x8, scoped, tag = 'scoped memory for tpu_custom_call.1']
    #allocation4 [shape = 's32[2]{0}', space=sflag, size = 0x8, scoped, tag = 'scoped memory for tpu_custom_call.1']
    #allocation5 [shape = 'u8[8192]{0}', space=vmem, size = 0x2000, scoped, tag = 'output window, operand 0']
    %6 = vsyncpa [#allocation3], 0
    %7 = vsyncpa [#allocation4], 0
    %s8 = scalar_lea.sflag [#allocation4], 1
    %9 = vsyncpa %s8, 0
    loop: start=0, step=1, limit=4
    $region2: #{tpu_custom_call.1} parent=1 // loop_pre_header
      _
    $region3: #{tpu_custom_call.1} parent=1 // loop_header
      %s11 = sphi 0, %s15
      %p12 = scmp.ge.s32.totalorder %s11, 4
      %s19 = sphi 0, %s19
      %s21 = sphi 0, %s19
      %s22 = sphi 0, %s21
      %s36 = sphi 0, %s22
      %s42 = sphi 0, %s44
      %s45 = sphi 0, %s42
      %s46 = sphi 0, %s45
      %s62 = sphi 0, %s46
    $region4: #{tpu_custom_call.1} parent=1 // loop_header_branch
      %14 = sbr.rel (%p12) target = $region8
    $region5: #{tpu_custom_call.1} parent=1 // loop_body
      %s16 = ssub.s32 %s11, 1
      %s17 = ssub.s32 %s11, 2
      %s18 = sadd.s32 %s11, 1
      %s20 = sadd.s32 %s19, 1
      %p23 = scmp.eq.s32.totalorder %s11, 1
      %p24 = scmp.ne.s32.totalorder %s19, %s21
      %p25 = scmp.eq.s32.totalorder %s11, 0
      %p26 = por %p24, %p25
      %p27 = scmp.ne.s32.totalorder %s19, %s21
      %p28 = scmp.eq.s32.totalorder %s16, 1
      %p29 = por %p27, %p28
      %p30 = scmp.ne.s32.totalorder %s21, %s22
      %p31 = scmp.eq.s32.totalorder %s16, 0
      %p32 = por %p30, %p31
      %p33 = scmp.ne.s32.totalorder %s21, %s22
      %p34 = scmp.eq.s32.totalorder %s17, 1
      %p35 = por %p33, %p34
      %p37 = scmp.ne.s32.totalorder %s22, %s36
      %p38 = scmp.eq.s32.totalorder %s17, 0
      %p39 = por %p37, %p38
      %s40 = ssub.s32 %s11, %s18
      %p41 = scmp.eq.s32.totalorder %s40, 0
      %s43 = sadd.s32 %s42, 1
      %s44 = scalar_select %p41, %s42, %s43
      %p47 = pneg %p41
      %p48 = scmp.eq.s32.totalorder %s11, 1
      %p49 = por %p47, %p48
      %p50 = scmp.ne.s32.totalorder %s42, %s45
      %p51 = scmp.eq.s32.totalorder %s11, 0
      %p52 = por %p50, %p51
      %p53 = scmp.ne.s32.totalorder %s42, %s45
      %p54 = scmp.eq.s32.totalorder %s16, 1
      %p55 = por %p53, %p54
      %p56 = scmp.ne.s32.totalorder %s45, %s46
      %p57 = scmp.eq.s32.totalorder %s16, 0
      %p58 = por %p56, %p57
      %p59 = scmp.ne.s32.totalorder %s45, %s46
      %p60 = scmp.eq.s32.totalorder %s17, 1
      %p61 = por %p59, %p60
      %p63 = scmp.ne.s32.totalorder %s46, %s62
      %p64 = scmp.eq.s32.totalorder %s17, 0
      %p65 = por %p63, %p64
      %p66 = scmp.le.s32.totalorder 1, %s11
      %p67 = scmp.lt.s32.totalorder %s11, 3
      %p68 = pnand %p66, %p67
      %p69 = pneg %p68
      // Predicated region
      $region9: #{tpu_custom_call.1} parent=5 // pred_check
        _
      $region10: #{tpu_custom_call.1} parent=5 // pred_check_branch
        %71 = sbr.rel (%p68) target = $region12
      $region11: #{tpu_custom_call.1} parent=5 // pred_region
        %s72 = ssub.s32 %s11, 1
        // Predicated region
        $region13: #{tpu_custom_call.1} parent=11 // pred_check
          %p73 = pneg %p32
        $region14: #{tpu_custom_call.1} parent=11 // pred_check_branch
          %75 = sbr.rel (%p73) target = $region16
        $region15: #{tpu_custom_call.1} parent=11 // pred_region
          %77 = vsyncadd [#allocation3], 0
          %s79 = sshll.u32 %s0, 4
          %s80 = int_to_ptr.hbm [resolvable:$true] %s79
          %s81 = sshll.u32 [#allocation2], 4
          %s82 = int_to_ptr.vmem [resolvable:$true] %s81
          %84 = dma.hbm_to_vmem [thread:$0]  %s80, 128, %s82, [#allocation3]
        $region16: #{tpu_custom_call.1} parent=11 // pred_fallthru
          _
      $region12: #{tpu_custom_call.1} parent=5 // pred_fallthru
        _
      %p85 = scmp.lt.s32.totalorder %s11, 2
      // Predicated region
      $region17: #{tpu_custom_call.1} parent=5 // pred_check
        %p86 = pneg %p85
      $region18: #{tpu_custom_call.1} parent=5 // pred_check_branch
        %88 = sbr.rel (%p86) target = $region20
      $region19: #{tpu_custom_call.1} parent=5 // pred_region
        _
      $region20: #{tpu_custom_call.1} parent=5 // pred_fallthru
        _
      %p89 = scmp.le.s32.totalorder 1, %s11
      %p90 = scmp.lt.s32.totalorder %s11, 3
      %p91 = pnand %p89, %p90
      %p92 = pneg %p91
      // Predicated region
      $region21: #{tpu_custom_call.1} parent=5 // pred_check
        _
      $region22: #{tpu_custom_call.1} parent=5 // pred_check_branch
        %94 = sbr.rel (%p91) target = $region24
      $region23: #{tpu_custom_call.1} parent=5 // pred_region
        %s95 = ssub.s32 %s11, 1
        // Predicated region
        $region25: #{tpu_custom_call.1} parent=23 // pred_check
          %p96 = pneg %p32
        $region26: #{tpu_custom_call.1} parent=23 // pred_check_branch
          %98 = sbr.rel (%p96) target = $region28
        $region27: #{tpu_custom_call.1} parent=23 // pred_region
          %100 = dma.done [#allocation3], 128
        $region28: #{tpu_custom_call.1} parent=23 // pred_fallthru
          _
        %p101 = pneg %p32
        %p102 = pneg %p29
        %p103 = pneg %p58
        %p104 = pneg %p55
        %s105 = sand.u32 %s45, 1
        %s106 = scalar_lea.sflag [#allocation4], %s105
        %s107 = sand.u32 %s45, 1
        %s108 = smul.addr %s107, 8
        %s109 = scalar_lea.vmem [#allocation5], %s108
        %v110 = vld [vmem:[#allocation2] sm:$0xff]
        %v111 = vmul.f32 %v110, 2.0
        %112 = vst [vmem:[%s109] sm:$0xff] %v111
        %s113 = sand.u32 %s45, 1
        %s114 = scalar_lea.sflag [#allocation4], %s113
        %s115 = sand.u32 %s45, 1
        %s116 = smul.addr %s115, 8
        %s117 = scalar_lea.vmem [#allocation5], %s116
        // Predicated region
        $region29: #{tpu_custom_call.1} parent=23 // pred_check
          %p118 = pneg %p55
        $region30: #{tpu_custom_call.1} parent=23 // pred_check_branch
          %120 = sbr.rel (%p118) target = $region32
        $region31: #{tpu_custom_call.1} parent=23 // pred_region
          %122 = vsyncadd %s114, 0
          %s123 = smul.addr %s16, 8
          %s124 = scalar_lea.hbm %s1, %s123
          %s126 = sshll.u32 %s117, 4
          %s127 = int_to_ptr.vmem [resolvable:$true] %s126
          %s128 = sshll.u32 %s124, 4
          %s129 = int_to_ptr.hbm [resolvable:$true] %s128
          %131 = dma.vmem_to_hbm [thread:$0]  %s127, 128, %s129, %s114
        $region32: #{tpu_custom_call.1} parent=23 // pred_fallthru
          _
      $region24: #{tpu_custom_call.1} parent=5 // pred_fallthru
        _
      %p132 = scmp.le.s32.totalorder 2, %s11
      // Predicated region
      $region33: #{tpu_custom_call.1} parent=5 // pred_check
        %p133 = pneg %p132
      $region34: #{tpu_custom_call.1} parent=5 // pred_check_branch
        %135 = sbr.rel (%p133) target = $region36
      $region35: #{tpu_custom_call.1} parent=5 // pred_region
        %s136 = ssub.s32 %s11, 2
        // Predicated region
        $region37: #{tpu_custom_call.1} parent=35 // pred_check
          %p137 = pneg %p61
        $region38: #{tpu_custom_call.1} parent=35 // pred_check_branch
          %139 = sbr.rel (%p137) target = $region40
        $region39: #{tpu_custom_call.1} parent=35 // pred_region
          %s140 = sand.u32 %s46, 1
          %s141 = scalar_lea.sflag [#allocation4], %s140
          %s142 = sand.u32 %s46, 1
          %s143 = smul.addr %s142, 8
          %s144 = scalar_lea.vmem [#allocation5], %s143
          %146 = dma.done %s141, 128
        $region40: #{tpu_custom_call.1} parent=35 // pred_fallthru
          _
      $region36: #{tpu_custom_call.1} parent=5 // pred_fallthru
        _
    $region6: #{tpu_custom_call.1} parent=1 // loop_footer
      %s15 = sadd.s32 1, %s11
    $region7: #{tpu_custom_call.1} parent=1 // loop_footer_branch
      %10 = sbr.rel target = $region3
    $region8: #{tpu_custom_call.1} parent=1 // loop_exit
      _
    %147 = vsyncpa [#allocation3], 1
    %s148 = scalar_lea.sflag [#allocation3], 1
    %149 = vsyncpa %s148, 1
    %150 = vsyncpa [#allocation4], 1
    %s151 = scalar_lea.sflag [#allocation4], 1
    %152 = vsyncpa %s151, 1

// kernel: tpu_custom_call.1
$region0: #{tpu_custom_call.1}
  #allocation0 [shape = 'u32[]', space=smem, size = 0x4, offset = 0x4, fixed_abs, tag = 'smem constant byte address 0x4 - core index']
  #allocation1 [shape = 'u32[72,128]{1,0:T(1,128)}', space=vmem, size = 0x9000, scoped, tag = 'internal scratch']
  %s0 = inlined_call_operand.hbm [shape: bf16[8,32], index: 0, kind: input, shape index: {}]
  %s1 = inlined_call_operand.hbm [shape: bf16[32,256], index: 1, kind: input, shape index: {}]
  %s2 = inlined_call_operand.hbm [shape: bf16[8,256], index: 2, kind: output, shape index: {}]
  %s3 = sld [smem:[#allocation0]]
  $region26: #{tpu_custom_call.1} parent=0
    _
  %s5 = ssub.s32 1, %s3
  %s6 = scalar_select 0, %s5, %s3
  $region1: #{tpu_custom_call.1} parent=0
    #allocation2 [shape = 'u8[2048]{0}', space=vmem, size = 0x800, scoped, tag = 'input window, operand 0, single buffered']
    #allocation3 [shape = 's32[1]{0}', space=sflag, size = 0x4, scoped, tag = 'scoped memory for tpu_custom_call.1']
    #allocation4 [shape = 's32[1]{0}', space=sflag, size = 0x4, scoped, tag = 'scoped memory for tpu_custom_call.1']
    #allocation5 [shape = 'u8[16384]{0}', space=vmem, size = 0x4000, scoped, tag = 'input window, operand 1, single buffered']
    #allocation6 [shape = 's32[1]{0}', space=sflag, size = 0x4, scoped, tag = 'scoped memory for tpu_custom_call.1']
    #allocation7 [shape = 'u8[4096]{0}', space=vmem, size = 0x1000, scoped, tag = 'output window, operand 0, single buffered']
    %7 = vsyncpa [#allocation3], 0
    %8 = vsyncpa [#allocation6], 0
    %9 = vsyncpa [#allocation4], 0
    // Predicated region
    $region2: #{tpu_custom_call.1} parent=1 // pred_check
      _
    $region3: #{tpu_custom_call.1} parent=1 // pred_check_branch
      %11 = sbr.rel (0) target = $region5
    $region4: #{tpu_custom_call.1} parent=1 // pred_region
      %13 = vsyncadd [#allocation3], 0
      %s15 = sshll.u32 %s0, 4
      %s16 = int_to_ptr.hbm [resolvable:$true] %s15
      %s17 = sshll.u32 [#allocation2], 4
      %s18 = int_to_ptr.vmem [resolvable:$true] %s17
      %20 = dma.hbm_to_vmem [thread:$0]  %s16, 64, %s18, [#allocation3]
    $region5: #{tpu_custom_call.1} parent=1 // pred_fallthru
      _
    // Predicated region
    $region6: #{tpu_custom_call.1} parent=1 // pred_check
      _
    $region7: #{tpu_custom_call.1} parent=1 // pred_check_branch
      %22 = sbr.rel (0) target = $region9
    $region8: #{tpu_custom_call.1} parent=1 // pred_region
      %24 = vsyncadd [#allocation6], 0
      %s25 = sshll.u32 %s1, 4
      %s26 = int_to_ptr.hbm [resolvable:$true] %s25
      %s27 = sshll.u32 [#allocation5], 4
      %s28 = int_to_ptr.vmem [resolvable:$true] %s27
      %33 = dma.hbm_to_vmem [thread:$0]  %s26, 512, %s28, [#allocation6], 128, 128, 8
    $region9: #{tpu_custom_call.1} parent=1 // pred_fallthru
      _
    // Predicated region
    $region10: #{tpu_custom_call.1} parent=1 // pred_check
      _
    $region11: #{tpu_custom_call.1} parent=1 // pred_check_branch
      %35 = sbr.rel (0) target = $region13
    $region12: #{tpu_custom_call.1} parent=1 // pred_region
      %37 = dma.done [#allocation3], 64
    $region13: #{tpu_custom_call.1} parent=1 // pred_fallthru
      _
    // Predicated region
    $region14: #{tpu_custom_call.1} parent=1 // pred_check
      _
    $region15: #{tpu_custom_call.1} parent=1 // pred_check_branch
      %39 = sbr.rel (0) target = $region17
    $region16: #{tpu_custom_call.1} parent=1 // pred_region
      %41 = dma.done [#allocation6], 512
    $region17: #{tpu_custom_call.1} parent=1 // pred_fallthru
      _
    %v43 = vld [vmem:[#allocation2] sm:$0xf]
    %v44 = vld [vmem:[#allocation5] sm:$0xff]
    %v45 = vld [vmem:[#allocation5 + $0x8] sm:$0xff]
    %v46 = vld [vmem:[#allocation5 + $0x10] sm:$0xff]
    %v47 = vld [vmem:[#allocation5 + $0x18] sm:$0xff]
    %v52 = vunpack.c.l.b16 %v44
    %v53 = vunpack.c.h.b16 %v44
    %v54 = vunpack.c.l.b16 %v45
    %v55 = vunpack.c.h.b16 %v45
    %v56 = vunpack.c.l.b16 %v46
    %v57 = vunpack.c.h.b16 %v46
    %v58 = vunpack.c.l.b16 %v47
    %v59 = vunpack.c.h.b16 %v47
    %v60 = vpack.c.b16 %v54, %v52
    %v61 = vpack.c.b16 %v55, %v53
    %v62 = vpack.c.b16 %v58, %v56
    %v63 = vpack.c.b16 %v59, %v57
    %vm68 = vcmask 261120
    %v70 = vsel %vm68, %v43, 0
    %72 = vmatpush.bf16.msra.mxu0 0
    %73 = vmatpush.bf16.msra.mxu0 0
    %74 = vmatpush.bf16.msra.mxu0 0
    %75 = vmatpush.bf16.msra.mxu0 0
    %76 = vmatpush.bf16.msra.mxu0 0
    %77 = vmatpush.bf16.msra.mxu0 0
    %78 = vmatpush.bf16.msra.mxu0 %v62
    %79 = vmatpush.bf16.msra.mxu0 %v60
    %80 = vmatmul.bf16.gmra.mxu0 %v70
    %v81 = vpop.f32.mrf.mxu0
    %v82 = vadd.f32 0.0, %v81
    %v83 = vpop.f32.mrf.mxu0
    %84 = vdwg.mxu0
    %85 = vmatpush.bf16.msra.mxu0 0
    %86 = vmatpush.bf16.msra.mxu0 0
    %87 = vmatpush.bf16.msra.mxu0 0
    %88 = vmatpush.bf16.msra.mxu0 0
    %89 = vmatpush.bf16.msra.mxu0 0
    %90 = vmatpush.bf16.msra.mxu0 0
    %91 = vmatpush.bf16.msra.mxu0 %v63
    %92 = vmatpush.bf16.msra.mxu0 %v61
    %93 = vmatmul.bf16.gmra.mxu0 %v70
    %v94 = vpop.f32.mrf.mxu0
    %v95 = vadd.f32 0.0, %v94
    %v96 = vpop.f32.mrf.mxu0
    %97 = vdwg.mxu0
    %v98 = vlaneseq
    %v99 = vand.u32 %v98, 127
    %v100 = vadd.s32 %v99, 128
    %vm101 = vcmp.lt.s32.totalorder %v99, 250
    %vm102 = vcmp.lt.s32.totalorder %v100, 250
    %v103 = vsel %vm101, %v82, -inf
    %v104 = vsel %vm102, %v95, -inf
    %v105 = vmax.f32 %v103, %v104
    %106 = vmax.xlane.f32.xlu0 %v105
    %v107 = vpop.xlane.xlu0 %106
    %v108 = vsub.f32 %v103, %v107
    %v109 = vsub.f32 %v104, %v107
    %v110 = vmul.f32 %v108, 1.442695
    %v111 = vpow.pop %v110
    %v112 = vmul.f32 %v109, 1.442695
    %v113 = vpow.pop %v112
    %v114 = vadd.f32 %v111, %v113
    %115 = vadd.xlane.f32.xlu0 %v114
    %v116 = vpop.xlane.xlu0 %115
    %v117 = vrcp.pop %v116
    %v118 = vmul.f32 %v111, %v117
    %v119 = vmul.f32 %v113, %v117
    %v120 = vpack.c.bf16 %v119, %v118
    %121 = vst [vmem:[#allocation7] sm:$0xff] %v120
    // Predicated region
    $region18: #{tpu_custom_call.1} parent=1 // pred_check
      _
    $region19: #{tpu_custom_call.1} parent=1 // pred_check_branch
      %123 = sbr.rel (0) target = $region21
    $region20: #{tpu_custom_call.1} parent=1 // pred_region
      %125 = vsyncadd [#allocation4], 0
      %s127 = sshll.u32 [#allocation7], 4
      %s128 = int_to_ptr.vmem [resolvable:$true] %s127
      %s129 = sshll.u32 %s2, 4
      %s130 = int_to_ptr.hbm [resolvable:$true] %s129
      %132 = dma.vmem_to_hbm [thread:$0]  %s128, 128, %s130, [#allocation4]
    $region21: #{tpu_custom_call.1} parent=1 // pred_fallthru
      _
    // Predicated region
    $region22: #{tpu_custom_call.1} parent=1 // pred_check
      _
    $region23: #{tpu_custom_call.1} parent=1 // pred_check_branch
      %134 = sbr.rel (0) target = $region25
    $region24: #{tpu_custom_call.1} parent=1 // pred_region
      %136 = dma.done [#allocation4], 128
    $region25: #{tpu_custom_call.1} parent=1 // pred_fallthru
      _
    %137 = vsyncpa [#allocation3], 1
    %138 = vsyncpa [#allocation6], 1
    %139 = vsyncpa [#allocation4], 1

</llo_original>
